<compile_context>
chip_gen: v5e
topology: v5e:2x2
jax: 0.10.0
libtpu: 0.0.40
codegen_flags: <defaults>
</compile_context>

<pallas_src>
from functools import partial

import jax
import jax.numpy as jnp
from jax import lax
from jax.experimental import pallas as pl
from jax.experimental.pallas import tpu as pltpu

_VMEM_LIMIT = 48 * 1024 * 1024   # fits v7x (64 MiB) with headroom; > scoped defaults


# --------------------------------------------------------------------------
# Pass 1: Bridgeout noise — W' = W + |W|^(q/2) * (mask/p - 1), written once.
# --------------------------------------------------------------------------
def _bridgeout_noise_kernel(w_ref, u_ref, wout_ref, *, p, q):
    w = w_ref[...]
    aw = jnp.abs(w)
    # |w|^(q/2); guard w == 0 so the exp/log EUP path can't produce NaN/Inf.
    mag = jnp.where(aw > 0, jnp.power(aw, q * 0.5), 0.0)
    keep = u_ref[...] > p                                  # P(keep) = 1 - p
    noise = jnp.where(keep, (1.0 - p) / p, -1.0) * mag     # no per-elem divide
    wout_ref[...] = (w + noise).astype(wout_ref.dtype)


def bridgeout_noisy_weight(weight, uniform, *, p, q, t_out=256, t_in=512):
    d_out, d_in = weight.shape
    t_out = min(t_out, d_out)
    t_in = min(t_in, d_in)
    assert d_out % t_out == 0 and d_in % t_in == 0, (
        "demo wrapper assumes tile-aligned weight shapes")

    kernel = partial(_bridgeout_noise_kernel, p=p, q=q)
    return pl.pallas_call(
        kernel,
        out_shape=jax.ShapeDtypeStruct((d_out, d_in), jnp.float32),
        grid_spec=pltpu.PrefetchScalarGridSpec(
            num_scalar_prefetch=0,
            grid=(d_out // t_out, d_in // t_in),
            in_specs=[
                pl.BlockSpec((t_out, t_in), lambda i, j: (i, j)),   # W
                pl.BlockSpec((t_out, t_in), lambda i, j: (i, j)),   # uniform
            ],
            out_specs=pl.BlockSpec((t_out, t_in), lambda i, j: (i, j)),
        ),
        compiler_params=pltpu.CompilerParams(
            dimension_semantics=("parallel", "parallel"),
            vmem_limit_bytes=_VMEM_LIMIT,
        ),
    )(weight, uniform)


# --------------------------------------------------------------------------
# Pass 2: tiled linear — y = x @ W'.T + bias (W' in native [d_out, d_in]).
# --------------------------------------------------------------------------
def _linear_kernel(x_ref, w_ref, b_ref, y_ref, acc_ref):
    k = pl.program_id(2)

    @pl.when(k == 0)
    def _():
        acc_ref[...] = jnp.zeros_like(acc_ref)

    # x: [tm, tk], w: [tn, tk] (native layout) — contract last dims of both.
    acc_ref[...] += lax.dot_general(
        x_ref[...], w_ref[...],
        dimension_numbers=(((1,), (1,)), ((), ())),
        preferred_element_type=jnp.float32)

    @pl.when(k == pl.num_programs(2) - 1)
    def _():
        y_ref[...] = (acc_ref[...] + b_ref[...]).astype(y_ref.dtype)


def linear_forward(x, w, bias, *, tm=256, tn=256, tk=512, out_dtype=jnp.float32):
    B, d_in = x.shape
    d_out, d_in_w = w.shape
    assert d_in == d_in_w
    tm = min(tm, B)
    tn = min(tn, d_out)
    tk = min(tk, d_in)
    assert B % tm == 0 and d_out % tn == 0 and d_in % tk == 0, (
        "demo wrapper assumes tile-aligned shapes")

    bias2d = bias.reshape(1, d_out).astype(jnp.float32)
    grid = (B // tm, d_out // tn, d_in // tk)

    return pl.pallas_call(
        _linear_kernel,
        out_shape=jax.ShapeDtypeStruct((B, d_out), out_dtype),
        grid_spec=pltpu.PrefetchScalarGridSpec(
            num_scalar_prefetch=0,
            grid=grid,
            in_specs=[
                pl.BlockSpec((tm, tk), lambda i, j, k: (i, k)),   # x
                pl.BlockSpec((tn, tk), lambda i, j, k: (j, k)),   # W' (native)
                pl.BlockSpec((1, tn), lambda i, j, k: (0, j)),    # bias
            ],
            out_specs=pl.BlockSpec((tm, tn), lambda i, j, k: (i, j)),
            scratch_shapes=[pltpu.VMEM((tm, tn), jnp.float32)],
        ),
        compiler_params=pltpu.CompilerParams(
            dimension_semantics=("parallel", "parallel", "arbitrary"),
            vmem_limit_bytes=_VMEM_LIMIT,
        ),
    )(x, w, bias2d)


# --------------------------------------------------------------------------
# Top-level Bridgeout(nn.Linear) forward.
# --------------------------------------------------------------------------
def bridgeout_linear(x, weight, bias, rng_key, *, p=0.7, q=0.7,
                     compute_dtype=jnp.float32, tm=256, tn=256, tk=512):
    """Bridgeout-perturbed nn.Linear: y = x @ (W + noise).T + b.

    Returns (y, w_noisy) with w_noisy in native [d_out, d_in] layout.
    Noise is realized once per call (one perturbation per forward pass).
    """
    assert 0.0 < p < 1.0, "Bridgeout p must be in (0, 1)"
    # TODO(synk): the PyTorch module mutates self.layer.weight in place
    # (noise compounds across forwards); here we keep single-forward semantics.
    uniform = jax.random.uniform(rng_key, weight.shape, dtype=jnp.float32)
    w_noisy = bridgeout_noisy_weight(weight.astype(jnp.float32), uniform, p=p, q=q)

    # Cast matmul operands once in the wrapper (no-op when f32).
    x_c = x.astype(compute_dtype)
    w_c = w_noisy.astype(compute_dtype)
    y = linear_forward(x_c, w_c, bias, tm=tm, tn=tn, tk=tk,
                       out_dtype=jnp.float32)
    return y, w_noisy


if __name__ == "__main__":
    key = jax.random.PRNGKey(0)
    k_x, k_w, k_b, k_noise = jax.random.split(key, 4)

    # Small but lane-dense, tile-aligned demo shapes (multiples of (8, 128)).
    B, D_IN, D_OUT = 16, 256, 256
    P, Q = 0.7, 0.7

    x = jax.random.normal(k_x, (B, D_IN), dtype=jnp.float32)
    bound = 1.0 / jnp.sqrt(jnp.float32(D_IN))       # nn.Linear-style init
    weight = jax.random.uniform(k_w, (D_OUT, D_IN), jnp.float32, -bound, bound)
    bias = jax.random.uniform(k_b, (D_OUT,), jnp.float32, -bound, bound)

    # ---------------- f32 matmul path -------------------------------------
    y, w_noisy = bridgeout_linear(x, weight, bias, k_noise, p=P, q=Q,
                                  compute_dtype=jnp.float32)
    y = jax.block_until_ready(y)
    assert y.shape == (B, D_OUT)

    # (a) the linear layer reproduces x @ W'.T + b on the kernel's own W'
    ref_y = jnp.dot(x, w_noisy.T, preferred_element_type=jnp.float32) + bias[None, :]
    assert jnp.allclose(y, ref_y, atol=2e-3, rtol=2e-3), "matmul/bias mismatch"

    # (b) every noise element takes one of the two admissible Bridgeout values
    #     noise = |w|^(q/2) * (mask/p - 1), mask in {0, 1}
    mag = jnp.power(jnp.abs(weight), Q * 0.5)
    noise = w_noisy - weight
    keep_val = (1.0 - P) / P * mag
    is_keep = jnp.isclose(noise, keep_val, atol=1e-5, rtol=1e-3)
    is_drop = jnp.isclose(noise, -mag, atol=1e-5, rtol=1e-3)
    assert bool(jnp.all(is_keep | is_drop)), "noise values off-manifold"

    # (c) empirical keep rate ~ (1 - p)
    keep_frac = float(jnp.mean(is_keep.astype(jnp.float32)))
    assert abs(keep_frac - (1.0 - P)) < 0.05, f"keep fraction {keep_frac}"

    # --------- bf16 matmul-operand path (f32 accumulate), looser check ----
    y_bf, w_noisy2 = bridgeout_linear(x, weight, bias, k_noise, p=P, q=Q,
                                      compute_dtype=jnp.bfloat16)
    y_bf = jax.block_until_ready(y_bf)
    ref_bf = jnp.dot(x.astype(jnp.bfloat16), w_noisy2.astype(jnp.bfloat16).T,
                     preferred_element_type=jnp.float32) + bias[None, :]
    assert jnp.allclose(y_bf, ref_bf, atol=2e-2, rtol=2e-2), "bf16 path mismatch"

    print("KERNEL_OK")
</pallas_src>

<mosaic_0001>
module attributes {stable_mosaic.version = 11 : i64} {
  func.func @_bridgeout_noise_kernel(%arg0: i32, %arg1: i32, %arg2: memref<256x256xf32, #tpu.memory_space<vmem>>, %arg3: memref<256x256xf32, #tpu.memory_space<vmem>>, %arg4: memref<256x256xf32, #tpu.memory_space<vmem>>) attributes {dimension_semantics = [#tpu.dimension_semantics<parallel>, #tpu.dimension_semantics<parallel>], iteration_bounds = array<i64: 1, 1>, scalar_prefetch = 0 : i64, scratch_operands = 0 : i64, tpu.core_type = #tpu.core_type<tc>, window_params = [{transform_indices = @transform_0, window_bounds = array<i64: 256, 256>}, {transform_indices = @transform_1, window_bounds = array<i64: 256, 256>}, {transform_indices = @transform_2, window_bounds = array<i64: 256, 256>}]} {
    %c0 = arith.constant 0 : index
    %c0_0 = arith.constant 0 : index
    %0 = vector.load %arg2[%c0, %c0_0] : memref<256x256xf32, #tpu.memory_space<vmem>>, vector<256x256xf32>
    %1 = math.absf %0 : vector<256x256xf32>
    %cst = arith.constant 0.000000e+00 : f32
    %2 = vector.broadcast %cst : f32 to vector<256x256xf32>
    %3 = arith.cmpf ogt, %1, %2 : vector<256x256xf32>
    %cst_1 = arith.constant 3.500000e-01 : f32
    %4 = vector.broadcast %cst_1 : f32 to vector<256x256xf32>
    %5 = math.powf %1, %4 : vector<256x256xf32>
    %cst_2 = arith.constant 0.000000e+00 : f32
    %6 = vector.broadcast %cst_2 : f32 to vector<256x256xf32>
    %7 = arith.select %3, %5, %6 : vector<256x256xi1>, vector<256x256xf32>
    %c0_3 = arith.constant 0 : index
    %c0_4 = arith.constant 0 : index
    %8 = vector.load %arg3[%c0_3, %c0_4] : memref<256x256xf32, #tpu.memory_space<vmem>>, vector<256x256xf32>
    %cst_5 = arith.constant 0.699999988 : f32
    %9 = vector.broadcast %cst_5 : f32 to vector<256x256xf32>
    %10 = arith.cmpf ogt, %8, %9 : vector<256x256xf32>
    %cst_6 = arith.constant 0.428571433 : f32
    %cst_7 = arith.constant -1.000000e+00 : f32
    %11 = vector.broadcast %cst_6 : f32 to vector<256x256xf32>
    %12 = vector.broadcast %cst_7 : f32 to vector<256x256xf32>
    %13 = arith.select %10, %11, %12 : vector<256x256xi1>, vector<256x256xf32>
    %14 = arith.mulf %13, %7 : vector<256x256xf32>
    %15 = arith.addf %0, %14 : vector<256x256xf32>
    %c0_8 = arith.constant 0 : index
    %c0_9 = arith.constant 0 : index
    %16 = vector.load %arg4[%c0_8, %c0_9] : memref<256x256xf32, #tpu.memory_space<vmem>>, vector<256x256xf32>
    tpu.vector_store %arg4[%c0_8, %c0_9], %15 {strides = array<i32>} : memref<256x256xf32, #tpu.memory_space<vmem>>, vector<256x256xf32>,
    return
  }
  func.func @transform_0(%arg0: i32, %arg1: i32) -> (i32, i32) {
    %c0_i32 = arith.constant 0 : i32
    return %arg0, %arg1 : i32, i32
  }
  func.func @transform_1(%arg0: i32, %arg1: i32) -> (i32, i32) {
    %c0_i32 = arith.constant 0 : i32
    return %arg0, %arg1 : i32, i32
  }
  func.func @transform_2(%arg0: i32, %arg1: i32) -> (i32, i32) {
    %c0_i32 = arith.constant 0 : i32
    return %arg0, %arg1 : i32, i32
  }
}

</mosaic_0001>

<llo_original>
// kernel: tpu_custom_call.1
$region0: #{tpu_custom_call.1}
  #allocation0 [shape = 'u32[]', space=smem, size = 0x4, offset = 0x4, fixed_abs, tag = 'smem constant byte address 0x4 - core index']
  #allocation1 [shape = 'u32[72,128]{1,0:T(1,128)}', space=vmem, size = 0x9000, scoped, tag = 'internal scratch']
  %s0 = inlined_call_operand.hbm [shape: f32[256,256], index: 0, kind: input, shape index: {}]
  %s1 = inlined_call_operand.hbm [shape: f32[256,256], index: 1, kind: input, shape index: {}]
  %s2 = inlined_call_operand.hbm [shape: f32[256,256], index: 2, kind: output, shape index: {}]
  %s3 = sld [smem:[#allocation0]]
  $region26: #{tpu_custom_call.1} parent=0
    _
  %s5 = ssub.s32 1, %s3
  %s6 = scalar_select 0, %s5, %s3
  $region1: #{tpu_custom_call.1} parent=0
    #allocation2 [shape = 'u8[262144]{0}', space=vmem, size = 0x40000, scoped, tag = 'input window, operand 0, single buffered']
    #allocation3 [shape = 's32[1]{0}', space=sflag, size = 0x4, scoped, tag = 'scoped memory for tpu_custom_call.1']
    #allocation4 [shape = 's32[1]{0}', space=sflag, size = 0x4, scoped, tag = 'scoped memory for tpu_custom_call.1']
    #allocation5 [shape = 'u8[262144]{0}', space=vmem, size = 0x40000, scoped, tag = 'input window, operand 1, single buffered']
    #allocation6 [shape = 's32[1]{0}', space=sflag, size = 0x4, scoped, tag = 'scoped memory for tpu_custom_call.1']
    #allocation7 [shape = 'u8[262144]{0}', space=vmem, size = 0x40000, scoped, tag = 'output window, operand 0, single buffered']
    %7 = vsyncpa [#allocation3], 0
    %8 = vsyncpa [#allocation6], 0
    %9 = vsyncpa [#allocation4], 0
    // Predicated region
    $region2: #{tpu_custom_call.1} parent=1 // pred_check
      _
    $region3: #{tpu_custom_call.1} parent=1 // pred_check_branch
      %11 = sbr.rel (0) target = $region5
    $region4: #{tpu_custom_call.1} parent=1 // pred_region
      %13 = vsyncadd [#allocation3], 0
      %s14 = sshll.u32 %s0, 4
      %s15 = int_to_ptr.hbm [resolvable:$true] %s14
      %s16 = sshll.u32 [#allocation2], 4
      %s17 = int_to_ptr.vmem [resolvable:$true] %s16
      %22 = dma.hbm_to_vmem [thread:$0]  %s15, 8192, %s17, [#allocation3], 256, 256, 16
    $region5: #{tpu_custom_call.1} parent=1 // pred_fallthru
      _
    // Predicated region
    $region6: #{tpu_custom_call.1} parent=1 // pred_check
      _
    $region7: #{tpu_custom_call.1} parent=1 // pred_check_branch
      %24 = sbr.rel (0) target = $region9
    $region8: #{tpu_custom_call.1} parent=1 // pred_region
      %26 = vsyncadd [#allocation6], 0
      %s27 = sshll.u32 %s1, 4
      %s28 = int_to_ptr.hbm [resolvable:$true] %s27
      %s29 = sshll.u32 [#allocation5], 4
      %s30 = int_to_ptr.vmem [resolvable:$true] %s29
      %35 = dma.hbm_to_vmem [thread:$0]  %s28, 8192, %s30, [#allocation6], 256, 256, 16
    $region9: #{tpu_custom_call.1} parent=1 // pred_fallthru
      _
    // Predicated region
    $region10: #{tpu_custom_call.1} parent=1 // pred_check
      _
    $region11: #{tpu_custom_call.1} parent=1 // pred_check_branch
      %37 = sbr.rel (0) target = $region13
    $region12: #{tpu_custom_call.1} parent=1 // pred_region
      %39 = dma.done [#allocation3], 8192
    $region13: #{tpu_custom_call.1} parent=1 // pred_fallthru
      _
    // Predicated region
    $region14: #{tpu_custom_call.1} parent=1 // pred_check
      _
    $region15: #{tpu_custom_call.1} parent=1 // pred_check_branch
      %41 = sbr.rel (0) target = $region17
    $region16: #{tpu_custom_call.1} parent=1 // pred_region
      %43 = dma.done [#allocation6], 8192
    $region17: #{tpu_custom_call.1} parent=1 // pred_fallthru
      _
    %v44 = vld [vmem:[#allocation2] sm:$0xff]
    %v45 = vld [vmem:[#allocation2 + $0x8] sm:$0xff]
    %v46 = vld [vmem:[#allocation2 + $0x10] sm:$0xff]
    %v47 = vld [vmem:[#allocation2 + $0x18] sm:$0xff]
    %v48 = vld [vmem:[#allocation2 + $0x20] sm:$0xff]
    %v49 = vld [vmem:[#allocation2 + $0x28] sm:$0xff]
    %v50 = vld [vmem:[#allocation2 + $0x30] sm:$0xff]
    %v51 = vld [vmem:[#allocation2 + $0x38] sm:$0xff]
    %v52 = vld [vmem:[#allocation2 + $0x40] sm:$0xff]
    %v53 = vld [vmem:[#allocation2 + $0x48] sm:$0xff]
    %v54 = vld [vmem:[#allocation2 + $0x50] sm:$0xff]
    %v55 = vld [vmem:[#allocation2 + $0x58] sm:$0xff]
    %v56 = vld [vmem:[#allocation2 + $0x60] sm:$0xff]
    %v57 = vld [vmem:[#allocation2 + $0x68] sm:$0xff]
    %v58 = vld [vmem:[#allocation2 + $0x70] sm:$0xff]
    %v59 = vld [vmem:[#allocation2 + $0x78] sm:$0xff]
    %v60 = vld [vmem:[#allocation2 + $0x80] sm:$0xff]
    %v61 = vld [vmem:[#allocation2 + $0x88] sm:$0xff]
    %v62 = vld [vmem:[#allocation2 + $0x90] sm:$0xff]
    %v63 = vld [vmem:[#allocation2 + $0x98] sm:$0xff]
    %v64 = vld [vmem:[#allocation2 + $0xa0] sm:$0xff]
    %v65 = vld [vmem:[#allocation2 + $0xa8] sm:$0xff]
    %v66 = vld [vmem:[#allocation2 + $0xb0] sm:$0xff]
    %v67 = vld [vmem:[#allocation2 + $0xb8] sm:$0xff]
    %v68 = vld [vmem:[#allocation2 + $0xc0] sm:$0xff]
    %v69 = vld [vmem:[#allocation2 + $0xc8] sm:$0xff]
    %v70 = vld [vmem:[#allocation2 + $0xd0] sm:$0xff]
    %v71 = vld [vmem:[#allocation2 + $0xd8] sm:$0xff]
    %v72 = vld [vmem:[#allocation2 + $0xe0] sm:$0xff]
    %v73 = vld [vmem:[#allocation2 + $0xe8] sm:$0xff]
    %v74 = vld [vmem:[#allocation2 + $0xf0] sm:$0xff]
    %v75 = vld [vmem:[#allocation2 + $0xf8] sm:$0xff]
    %v76 = vld [vmem:[#allocation2 + $0x100] sm:$0xff]
    %v77 = vld [vmem:[#allocation2 + $0x108] sm:$0xff]
    %v78 = vld [vmem:[#allocation2 + $0x110] sm:$0xff]
    %v79 = vld [vmem:[#allocation2 + $0x118] sm:$0xff]
    %v80 = vld [vmem:[#allocation2 + $0x120] sm:$0xff]
    %v81 = vld [vmem:[#allocation2 + $0x128] sm:$0xff]
    %v82 = vld [vmem:[#allocation2 + $0x130] sm:$0xff]
    %v83 = vld [vmem:[#allocation2 + $0x138] sm:$0xff]
    %v84 = vld [vmem:[#allocation2 + $0x140] sm:$0xff]
    %v85 = vld [vmem:[#allocation2 + $0x148] sm:$0xff]
    %v86 = vld [vmem:[#allocation2 + $0x150] sm:$0xff]
    %v87 = vld [vmem:[#allocation2 + $0x158] sm:$0xff]
    %v88 = vld [vmem:[#allocation2 + $0x160] sm:$0xff]
    %v89 = vld [vmem:[#allocation2 + $0x168] sm:$0xff]
    %v90 = vld [vmem:[#allocation2 + $0x170] sm:$0xff]
    %v91 = vld [vmem:[#allocation2 + $0x178] sm:$0xff]
    %v92 = vld [vmem:[#allocation2 + $0x180] sm:$0xff]
    %v93 = vld [vmem:[#allocation2 + $0x188] sm:$0xff]
    %v94 = vld [vmem:[#allocation2 + $0x190] sm:$0xff]
    %v95 = vld [vmem:[#allocation2 + $0x198] sm:$0xff]
    %v96 = vld [vmem:[#allocation2 + $0x1a0] sm:$0xff]
    %v97 = vld [vmem:[#allocation2 + $0x1a8] sm:$0xff]
    %v98 = vld [vmem:[#allocation2 + $0x1b0] sm:$0xff]
    %v99 = vld [vmem:[#allocation2 + $0x1b8] sm:$0xff]
    %v100 = vld [vmem:[#allocation2 + $0x1c0] sm:$0xff]
    %v101 = vld [vmem:[#allocation2 + $0x1c8] sm:$0xff]
    %v102 = vld [vmem:[#allocation2 + $0x1d0] sm:$0xff]
    %v103 = vld [vmem:[#allocation2 + $0x1d8] sm:$0xff]
    %v104 = vld [vmem:[#allocation2 + $0x1e0] sm:$0xff]
    %v105 = vld [vmem:[#allocation2 + $0x1e8] sm:$0xff]
    %v106 = vld [vmem:[#allocation2 + $0x1f0] sm:$0xff]
    %v107 = vld [vmem:[#allocation2 + $0x1f8] sm:$0xff]
    %v108 = vand.u32 2147483647, %v44
    %v109 = vand.u32 2147483647, %v45
    %v110 = vand.u32 2147483647, %v46
    %v111 = vand.u32 2147483647, %v47
    %v112 = vand.u32 2147483647, %v48
    %v113 = vand.u32 2147483647, %v49
    %v114 = vand.u32 2147483647, %v50
    %v115 = vand.u32 2147483647, %v51
    %v116 = vand.u32 2147483647, %v52
    %v117 = vand.u32 2147483647, %v53
    %v118 = vand.u32 2147483647, %v54
    %v119 = vand.u32 2147483647, %v55
    %v120 = vand.u32 2147483647, %v56
    %v121 = vand.u32 2147483647, %v57
    %v122 = vand.u32 2147483647, %v58
    %v123 = vand.u32 2147483647, %v59
    %v124 = vand.u32 2147483647, %v60
    %v125 = vand.u32 2147483647, %v61
    %v126 = vand.u32 2147483647, %v62
    %v127 = vand.u32 2147483647, %v63
    %v128 = vand.u32 2147483647, %v64
    %v129 = vand.u32 2147483647, %v65
    %v130 = vand.u32 2147483647, %v66
    %v131 = vand.u32 2147483647, %v67
    %v132 = vand.u32 2147483647, %v68
    %v133 = vand.u32 2147483647, %v69
    %v134 = vand.u32 2147483647, %v70
    %v135 = vand.u32 2147483647, %v71
    %v136 = vand.u32 2147483647, %v72
    %v137 = vand.u32 2147483647, %v73
    %v138 = vand.u32 2147483647, %v74
    %v139 = vand.u32 2147483647, %v75
    %v140 = vand.u32 2147483647, %v76
    %v141 = vand.u32 2147483647, %v77
    %v142 = vand.u32 2147483647, %v78
    %v143 = vand.u32 2147483647, %v79
    %v144 = vand.u32 2147483647, %v80
    %v145 = vand.u32 2147483647, %v81
    %v146 = vand.u32 2147483647, %v82
    %v147 = vand.u32 2147483647, %v83
    %v148 = vand.u32 2147483647, %v84
    %v149 = vand.u32 2147483647, %v85
    %v150 = vand.u32 2147483647, %v86
    %v151 = vand.u32 2147483647, %v87
    %v152 = vand.u32 2147483647, %v88
    %v153 = vand.u32 2147483647, %v89
    %v154 = vand.u32 2147483647, %v90
    %v155 = vand.u32 2147483647, %v91
    %v156 = vand.u32 2147483647, %v92
    %v157 = vand.u32 2147483647, %v93
    %v158 = vand.u32 2147483647, %v94
    %v159 = vand.u32 2147483647, %v95
    %v160 = vand.u32 2147483647, %v96
    %v161 = vand.u32 2147483647, %v97
    %v162 = vand.u32 2147483647, %v98
    %v163 = vand.u32 2147483647, %v99
    %v164 = vand.u32 2147483647, %v100
    %v165 = vand.u32 2147483647, %v101
    %v166 = vand.u32 2147483647, %v102
    %v167 = vand.u32 2147483647, %v103
    %v168 = vand.u32 2147483647, %v104
    %v169 = vand.u32 2147483647, %v105
    %v170 = vand.u32 2147483647, %v106
    %v171 = vand.u32 2147483647, %v107
    %vm172 = vcmp.gt.f32.partialorder %v108, 0.0
    %vm173 = vcmp.gt.f32.partialorder %v109, 0.0
    %vm174 = vcmp.gt.f32.partialorder %v110, 0.0
    %vm175 = vcmp.gt.f32.partialorder %v111, 0.0
    %vm176 = vcmp.gt.f32.partialorder %v112, 0.0
    %vm177 = vcmp.gt.f32.partialorder %v113, 0.0
    %vm178 = vcmp.gt.f32.partialorder %v114, 0.0
    %vm179 = vcmp.gt.f32.partialorder %v115, 0.0
    %vm180 = vcmp.gt.f32.partialorder %v116, 0.0
    %vm181 = vcmp.gt.f32.partialorder %v117, 0.0
    %vm182 = vcmp.gt.f32.partialorder %v118, 0.0
    %vm183 = vcmp.gt.f32.partialorder %v119, 0.0
    %vm184 = vcmp.gt.f32.partialorder %v120, 0.0
    %vm185 = vcmp.gt.f32.partialorder %v121, 0.0
    %vm186 = vcmp.gt.f32.partialorder %v122, 0.0
    %vm187 = vcmp.gt.f32.partialorder %v123, 0.0
    %vm188 = vcmp.gt.f32.partialorder %v124, 0.0
    %vm189 = vcmp.gt.f32.partialorder %v125, 0.0
    %vm190 = vcmp.gt.f32.partialorder %v126, 0.0
    %vm191 = vcmp.gt.f32.partialorder %v127, 0.0
    %vm192 = vcmp.gt.f32.partialorder %v128, 0.0
    %vm193 = vcmp.gt.f32.partialorder %v129, 0.0
    %vm194 = vcmp.gt.f32.partialorder %v130, 0.0
    %vm195 = vcmp.gt.f32.partialorder %v131, 0.0
    %vm196 = vcmp.gt.f32.partialorder %v132, 0.0
    %vm197 = vcmp.gt.f32.partialorder %v133, 0.0
    %vm198 = vcmp.gt.f32.partialorder %v134, 0.0
    %vm199 = vcmp.gt.f32.partialorder %v135, 0.0
    %vm200 = vcmp.gt.f32.partialorder %v136, 0.0
    %vm201 = vcmp.gt.f32.partialorder %v137, 0.0
    %vm202 = vcmp.gt.f32.partialorder %v138, 0.0
    %vm203 = vcmp.gt.f32.partialorder %v139, 0.0
    %vm204 = vcmp.gt.f32.partialorder %v140, 0.0
    %vm205 = vcmp.gt.f32.partialorder %v141, 0.0
    %vm206 = vcmp.gt.f32.partialorder %v142, 0.0
    %vm207 = vcmp.gt.f32.partialorder %v143, 0.0
    %vm208 = vcmp.gt.f32.partialorder %v144, 0.0
    %vm209 = vcmp.gt.f32.partialorder %v145, 0.0
    %vm210 = vcmp.gt.f32.partialorder %v146, 0.0
    %vm211 = vcmp.gt.f32.partialorder %v147, 0.0
    %vm212 = vcmp.gt.f32.partialorder %v148, 0.0
    %vm213 = vcmp.gt.f32.partialorder %v149, 0.0
    %vm214 = vcmp.gt.f32.partialorder %v150, 0.0
    %vm215 = vcmp.gt.f32.partialorder %v151, 0.0
    %vm216 = vcmp.gt.f32.partialorder %v152, 0.0
    %vm217 = vcmp.gt.f32.partialorder %v153, 0.0
    %vm218 = vcmp.gt.f32.partialorder %v154, 0.0
    %vm219 = vcmp.gt.f32.partialorder %v155, 0.0
    %vm220 = vcmp.gt.f32.partialorder %v156, 0.0
    %vm221 = vcmp.gt.f32.partialorder %v157, 0.0
    %vm222 = vcmp.gt.f32.partialorder %v158, 0.0
    %vm223 = vcmp.gt.f32.partialorder %v159, 0.0
    %vm224 = vcmp.gt.f32.partialorder %v160, 0.0
    %vm225 = vcmp.gt.f32.partialorder %v161, 0.0
    %vm226 = vcmp.gt.f32.partialorder %v162, 0.0
    %vm227 = vcmp.gt.f32.partialorder %v163, 0.0
    %vm228 = vcmp.gt.f32.partialorder %v164, 0.0
    %vm229 = vcmp.gt.f32.partialorder %v165, 0.0
    %vm230 = vcmp.gt.f32.partialorder %v166, 0.0
    %vm231 = vcmp.gt.f32.partialorder %v167, 0.0
    %vm232 = vcmp.gt.f32.partialorder %v168, 0.0
    %vm233 = vcmp.gt.f32.partialorder %v169, 0.0
    %vm234 = vcmp.gt.f32.partialorder %v170, 0.0
    %vm235 = vcmp.gt.f32.partialorder %v171, 0.0
    %v236 = vpow.f32 %v108, 0.35
    %v237 = vpow.f32 %v109, 0.35
    %v238 = vpow.f32 %v110, 0.35
    %v239 = vpow.f32 %v111, 0.35
    %v240 = vpow.f32 %v112, 0.35
    %v241 = vpow.f32 %v113, 0.35
    %v242 = vpow.f32 %v114, 0.35
    %v243 = vpow.f32 %v115, 0.35
    %v244 = vpow.f32 %v116, 0.35
    %v245 = vpow.f32 %v117, 0.35
    %v246 = vpow.f32 %v118, 0.35
    %v247 = vpow.f32 %v119, 0.35
    %v248 = vpow.f32 %v120, 0.35
    %v249 = vpow.f32 %v121, 0.35
    %v250 = vpow.f32 %v122, 0.35
    %v251 = vpow.f32 %v123, 0.35
    %v252 = vpow.f32 %v124, 0.35
    %v253 = vpow.f32 %v125, 0.35
    %v254 = vpow.f32 %v126, 0.35
    %v255 = vpow.f32 %v127, 0.35
    %v256 = vpow.f32 %v128, 0.35
    %v257 = vpow.f32 %v129, 0.35
    %v258 = vpow.f32 %v130, 0.35
    %v259 = vpow.f32 %v131, 0.35
    %v260 = vpow.f32 %v132, 0.35
    %v261 = vpow.f32 %v133, 0.35
    %v262 = vpow.f32 %v134, 0.35
    %v263 = vpow.f32 %v135, 0.35
    %v264 = vpow.f32 %v136, 0.35
    %v265 = vpow.f32 %v137, 0.35
    %v266 = vpow.f32 %v138, 0.35
    %v267 = vpow.f32 %v139, 0.35
    %v268 = vpow.f32 %v140, 0.35
    %v269 = vpow.f32 %v141, 0.35
    %v270 = vpow.f32 %v142, 0.35
    %v271 = vpow.f32 %v143, 0.35
    %v272 = vpow.f32 %v144, 0.35
    %v273 = vpow.f32 %v145, 0.35
    %v274 = vpow.f32 %v146, 0.35
    %v275 = vpow.f32 %v147, 0.35
    %v276 = vpow.f32 %v148, 0.35
    %v277 = vpow.f32 %v149, 0.35
    %v278 = vpow.f32 %v150, 0.35
    %v279 = vpow.f32 %v151, 0.35
    %v280 = vpow.f32 %v152, 0.35
    %v281 = vpow.f32 %v153, 0.35
    %v282 = vpow.f32 %v154, 0.35
    %v283 = vpow.f32 %v155, 0.35
    %v284 = vpow.f32 %v156, 0.35
    %v285 = vpow.f32 %v157, 0.35
    %v286 = vpow.f32 %v158, 0.35
    %v287 = vpow.f32 %v159, 0.35
    %v288 = vpow.f32 %v160, 0.35
    %v289 = vpow.f32 %v161, 0.35
    %v290 = vpow.f32 %v162, 0.35
    %v291 = vpow.f32 %v163, 0.35
    %v292 = vpow.f32 %v164, 0.35
    %v293 = vpow.f32 %v165, 0.35
    %v294 = vpow.f32 %v166, 0.35
    %v295 = vpow.f32 %v167, 0.35
    %v296 = vpow.f32 %v168, 0.35
    %v297 = vpow.f32 %v169, 0.35
    %v298 = vpow.f32 %v170, 0.35
    %v299 = vpow.f32 %v171, 0.35
    %v300 = vsel %vm172, %v236, 0.0
    %v301 = vsel %vm173, %v237, 0.0
    %v302 = vsel %vm174, %v238, 0.0
    %v303 = vsel %vm175, %v239, 0.0
    %v304 = vsel %vm176, %v240, 0.0
    %v305 = vsel %vm177, %v241, 0.0
    %v306 = vsel %vm178, %v242, 0.0
    %v307 = vsel %vm179, %v243, 0.0
    %v308 = vsel %vm180, %v244, 0.0
    %v309 = vsel %vm181, %v245, 0.0
    %v310 = vsel %vm182, %v246, 0.0
    %v311 = vsel %vm183, %v247, 0.0
    %v312 = vsel %vm184, %v248, 0.0
    %v313 = vsel %vm185, %v249, 0.0
    %v314 = vsel %vm186, %v250, 0.0
    %v315 = vsel %vm187, %v251, 0.0
    %v316 = vsel %vm188, %v252, 0.0
    %v317 = vsel %vm189, %v253, 0.0
    %v318 = vsel %vm190, %v254, 0.0
    %v319 = vsel %vm191, %v255, 0.0
    %v320 = vsel %vm192, %v256, 0.0
    %v321 = vsel %vm193, %v257, 0.0
    %v322 = vsel %vm194, %v258, 0.0
    %v323 = vsel %vm195, %v259, 0.0
    %v324 = vsel %vm196, %v260, 0.0
    %v325 = vsel %vm197, %v261, 0.0
    %v326 = vsel %vm198, %v262, 0.0
    %v327 = vsel %vm199, %v263, 0.0
    %v328 = vsel %vm200, %v264, 0.0
    %v329 = vsel %vm201, %v265, 0.0
    %v330 = vsel %vm202, %v266, 0.0
    %v331 = vsel %vm203, %v267, 0.0
    %v332 = vsel %vm204, %v268, 0.0
    %v333 = vsel %vm205, %v269, 0.0
    %v334 = vsel %vm206, %v270, 0.0
    %v335 = vsel %vm207, %v271, 0.0
    %v336 = vsel %vm208, %v272, 0.0
    %v337 = vsel %vm209, %v273, 0.0
    %v338 = vsel %vm210, %v274, 0.0
    %v339 = vsel %vm211, %v275, 0.0
    %v340 = vsel %vm212, %v276, 0.0
    %v341 = vsel %vm213, %v277, 0.0
    %v342 = vsel %vm214, %v278, 0.0
    %v343 = vsel %vm215, %v279, 0.0
    %v344 = vsel %vm216, %v280, 0.0
    %v345 = vsel %vm217, %v281, 0.0
    %v346 = vsel %vm218, %v282, 0.0
    %v347 = vsel %vm219, %v283, 0.0
    %v348 = vsel %vm220, %v284, 0.0
    %v349 = vsel %vm221, %v285, 0.0
    %v350 = vsel %vm222, %v286, 0.0
    %v351 = vsel %vm223, %v287, 0.0
    %v352 = vsel %vm224, %v288, 0.0
    %v353 = vsel %vm225, %v289, 0.0
    %v354 = vsel %vm226, %v290, 0.0
    %v355 = vsel %vm227, %v291, 0.0
    %v356 = vsel %vm228, %v292, 0.0
    %v357 = vsel %vm229, %v293, 0.0
    %v358 = vsel %vm230, %v294, 0.0
    %v359 = vsel %vm231, %v295, 0.0
    %v360 = vsel %vm232, %v296, 0.0
    %v361 = vsel %vm233, %v297, 0.0
    %v362 = vsel %vm234, %v298, 0.0
    %v363 = vsel %vm235, %v299, 0.0
    %v364 = vld [vmem:[#allocation5] sm:$0xff]
    %v365 = vld [vmem:[#allocation5 + $0x8] sm:$0xff]
    %v366 = vld [vmem:[#allocation5 + $0x10] sm:$0xff]
    %v367 = vld [vmem:[#allocation5 + $0x18] sm:$0xff]
    %v368 = vld [vmem:[#allocation5 + $0x20] sm:$0xff]
    %v369 = vld [vmem:[#allocation5 + $0x28] sm:$0xff]
    %v370 = vld [vmem:[#allocation5 + $0x30] sm:$0xff]
    %v371 = vld [vmem:[#allocation5 + $0x38] sm:$0xff]
    %v372 = vld [vmem:[#allocation5 + $0x40] sm:$0xff]
    %v373 = vld [vmem:[#allocation5 + $0x48] sm:$0xff]
    %v374 = vld [vmem:[#allocation5 + $0x50] sm:$0xff]
    %v375 = vld [vmem:[#allocation5 + $0x58] sm:$0xff]
    %v376 = vld [vmem:[#allocation5 + $0x60] sm:$0xff]
    %v377 = vld [vmem:[#allocation5 + $0x68] sm:$0xff]
    %v378 = vld [vmem:[#allocation5 + $0x70] sm:$0xff]
    %v379 = vld [vmem:[#allocation5 + $0x78] sm:$0xff]
    %v380 = vld [vmem:[#allocation5 + $0x80] sm:$0xff]
    %v381 = vld [vmem:[#allocation5 + $0x88] sm:$0xff]
    %v382 = vld [vmem:[#allocation5 + $0x90] sm:$0xff]
    %v383 = vld [vmem:[#allocation5 + $0x98] sm:$0xff]
    %v384 = vld [vmem:[#allocation5 + $0xa0] sm:$0xff]
    %v385 = vld [vmem:[#allocation5 + $0xa8] sm:$0xff]
    %v386 = vld [vmem:[#allocation5 + $0xb0] sm:$0xff]
    %v387 = vld [vmem:[#allocation5 + $0xb8] sm:$0xff]
    %v388 = vld [vmem:[#allocation5 + $0xc0] sm:$0xff]
    %v389 = vld [vmem:[#allocation5 + $0xc8] sm:$0xff]
    %v390 = vld [vmem:[#allocation5 + $0xd0] sm:$0xff]
    %v391 = vld [vmem:[#allocation5 + $0xd8] sm:$0xff]
    %v392 = vld [vmem:[#allocation5 + $0xe0] sm:$0xff]
    %v393 = vld [vmem:[#allocation5 + $0xe8] sm:$0xff]
    %v394 = vld [vmem:[#allocation5 + $0xf0] sm:$0xff]
    %v395 = vld [vmem:[#allocation5 + $0xf8] sm:$0xff]
    %v396 = vld [vmem:[#allocation5 + $0x100] sm:$0xff]
    %v397 = vld [vmem:[#allocation5 + $0x108] sm:$0xff]
    %v398 = vld [vmem:[#allocation5 + $0x110] sm:$0xff]
    %v399 = vld [vmem:[#allocation5 + $0x118] sm:$0xff]
    %v400 = vld [vmem:[#allocation5 + $0x120] sm:$0xff]
    %v401 = vld [vmem:[#allocation5 + $0x128] sm:$0xff]
    %v402 = vld [vmem:[#allocation5 + $0x130] sm:$0xff]
    %v403 = vld [vmem:[#allocation5 + $0x138] sm:$0xff]
    %v404 = vld [vmem:[#allocation5 + $0x140] sm:$0xff]
    %v405 = vld [vmem:[#allocation5 + $0x148] sm:$0xff]
    %v406 = vld [vmem:[#allocation5 + $0x150] sm:$0xff]
    %v407 = vld [vmem:[#allocation5 + $0x158] sm:$0xff]
    %v408 = vld [vmem:[#allocation5 + $0x160] sm:$0xff]
    %v409 = vld [vmem:[#allocation5 + $0x168] sm:$0xff]
    %v410 = vld [vmem:[#allocation5 + $0x170] sm:$0xff]
    %v411 = vld [vmem:[#allocation5 + $0x178] sm:$0xff]
    %v412 = vld [vmem:[#allocation5 + $0x180] sm:$0xff]
    %v413 = vld [vmem:[#allocation5 + $0x188] sm:$0xff]
    %v414 = vld [vmem:[#allocation5 + $0x190] sm:$0xff]
    %v415 = vld [vmem:[#allocation5 + $0x198] sm:$0xff]
    %v416 = vld [vmem:[#allocation5 + $0x1a0] sm:$0xff]
    %v417 = vld [vmem:[#allocation5 + $0x1a8] sm:$0xff]
    %v418 = vld [vmem:[#allocation5 + $0x1b0] sm:$0xff]
    %v419 = vld [vmem:[#allocation5 + $0x1b8] sm:$0xff]
    %v420 = vld [vmem:[#allocation5 + $0x1c0] sm:$0xff]
    %v421 = vld [vmem:[#allocation5 + $0x1c8] sm:$0xff]
    %v422 = vld [vmem:[#allocation5 + $0x1d0] sm:$0xff]
    %v423 = vld [vmem:[#allocation5 + $0x1d8] sm:$0xff]
    %v424 = vld [vmem:[#allocation5 + $0x1e0] sm:$0xff]
    %v425 = vld [vmem:[#allocation5 + $0x1e8] sm:$0xff]
    %v426 = vld [vmem:[#allocation5 + $0x1f0] sm:$0xff]
    %v427 = vld [vmem:[#allocation5 + $0x1f8] sm:$0xff]
    %vm428 = vcmp.gt.f32.partialorder %v364, 0.7
    %vm429 = vcmp.gt.f32.partialorder %v365, 0.7
    %vm430 = vcmp.gt.f32.partialorder %v366, 0.7
    %vm431 = vcmp.gt.f32.partialorder %v367, 0.7
    %vm432 = vcmp.gt.f32.partialorder %v368, 0.7
    %vm433 = vcmp.gt.f32.partialorder %v369, 0.7
    %vm434 = vcmp.gt.f32.partialorder %v370, 0.7
    %vm435 = vcmp.gt.f32.partialorder %v371, 0.7
    %vm436 = vcmp.gt.f32.partialorder %v372, 0.7
    %vm437 = vcmp.gt.f32.partialorder %v373, 0.7
    %vm438 = vcmp.gt.f32.partialorder %v374, 0.7
    %vm439 = vcmp.gt.f32.partialorder %v375, 0.7
    %vm440 = vcmp.gt.f32.partialorder %v376, 0.7
    %vm441 = vcmp.gt.f32.partialorder %v377, 0.7
    %vm442 = vcmp.gt.f32.partialorder %v378, 0.7
    %vm443 = vcmp.gt.f32.partialorder %v379, 0.7
    %vm444 = vcmp.gt.f32.partialorder %v380, 0.7
    %vm445 = vcmp.gt.f32.partialorder %v381, 0.7
    %vm446 = vcmp.gt.f32.partialorder %v382, 0.7
    %vm447 = vcmp.gt.f32.partialorder %v383, 0.7
    %vm448 = vcmp.gt.f32.partialorder %v384, 0.7
    %vm449 = vcmp.gt.f32.partialorder %v385, 0.7
    %vm450 = vcmp.gt.f32.partialorder %v386, 0.7
    %vm451 = vcmp.gt.f32.partialorder %v387, 0.7
    %vm452 = vcmp.gt.f32.partialorder %v388, 0.7
    %vm453 = vcmp.gt.f32.partialorder %v389, 0.7
    %vm454 = vcmp.gt.f32.partialorder %v390, 0.7
    %vm455 = vcmp.gt.f32.partialorder %v391, 0.7
    %vm456 = vcmp.gt.f32.partialorder %v392, 0.7
    %vm457 = vcmp.gt.f32.partialorder %v393, 0.7
    %vm458 = vcmp.gt.f32.partialorder %v394, 0.7
    %vm459 = vcmp.gt.f32.partialorder %v395, 0.7
    %vm460 = vcmp.gt.f32.partialorder %v396, 0.7
    %vm461 = vcmp.gt.f32.partialorder %v397, 0.7
    %vm462 = vcmp.gt.f32.partialorder %v398, 0.7
    %vm463 = vcmp.gt.f32.partialorder %v399, 0.7
    %vm464 = vcmp.gt.f32.partialorder %v400, 0.7
    %vm465 = vcmp.gt.f32.partialorder %v401, 0.7
    %vm466 = vcmp.gt.f32.partialorder %v402, 0.7
    %vm467 = vcmp.gt.f32.partialorder %v403, 0.7
    %vm468 = vcmp.gt.f32.partialorder %v404, 0.7
    %vm469 = vcmp.gt.f32.partialorder %v405, 0.7
    %vm470 = vcmp.gt.f32.partialorder %v406, 0.7
    %vm471 = vcmp.gt.f32.partialorder %v407, 0.7
    %vm472 = vcmp.gt.f32.partialorder %v408, 0.7
    %vm473 = vcmp.gt.f32.partialorder %v409, 0.7
    %vm474 = vcmp.gt.f32.partialorder %v410, 0.7
    %vm475 = vcmp.gt.f32.partialorder %v411, 0.7
    %vm476 = vcmp.gt.f32.partialorder %v412, 0.7
    %vm477 = vcmp.gt.f32.partialorder %v413, 0.7
    %vm478 = vcmp.gt.f32.partialorder %v414, 0.7
    %vm479 = vcmp.gt.f32.partialorder %v415, 0.7
    %vm480 = vcmp.gt.f32.partialorder %v416, 0.7
    %vm481 = vcmp.gt.f32.partialorder %v417, 0.7
    %vm482 = vcmp.gt.f32.partialorder %v418, 0.7
    %vm483 = vcmp.gt.f32.partialorder %v419, 0.7
    %vm484 = vcmp.gt.f32.partialorder %v420, 0.7
    %vm485 = vcmp.gt.f32.partialorder %v421, 0.7
    %vm486 = vcmp.gt.f32.partialorder %v422, 0.7
    %vm487 = vcmp.gt.f32.partialorder %v423, 0.7
    %vm488 = vcmp.gt.f32.partialorder %v424, 0.7
    %vm489 = vcmp.gt.f32.partialorder %v425, 0.7
    %vm490 = vcmp.gt.f32.partialorder %v426, 0.7
    %vm491 = vcmp.gt.f32.partialorder %v427, 0.7
    %v492 = vsel %vm428, 0.42857143, -1.0
    %v493 = vsel %vm429, 0.42857143, -1.0
    %v494 = vsel %vm430, 0.42857143, -1.0
    %v495 = vsel %vm431, 0.42857143, -1.0
    %v496 = vsel %vm432, 0.42857143, -1.0
    %v497 = vsel %vm433, 0.42857143, -1.0
    %v498 = vsel %vm434, 0.42857143, -1.0
    %v499 = vsel %vm435, 0.42857143, -1.0
    %v500 = vsel %vm436, 0.42857143, -1.0
    %v501 = vsel %vm437, 0.42857143, -1.0
    %v502 = vsel %vm438, 0.42857143, -1.0
    %v503 = vsel %vm439, 0.42857143, -1.0
    %v504 = vsel %vm440, 0.42857143, -1.0
    %v505 = vsel %vm441, 0.42857143, -1.0
    %v506 = vsel %vm442, 0.42857143, -1.0
    %v507 = vsel %vm443, 0.42857143, -1.0
    %v508 = vsel %vm444, 0.42857143, -1.0
    %v509 = vsel %vm445, 0.42857143, -1.0
    %v510 = vsel %vm446, 0.42857143, -1.0
    %v511 = vsel %vm447, 0.42857143, -1.0
    %v512 = vsel %vm448, 0.42857143, -1.0
    %v513 = vsel %vm449, 0.42857143, -1.0
    %v514 = vsel %vm450, 0.42857143, -1.0
    %v515 = vsel %vm451, 0.42857143, -1.0
    %v516 = vsel %vm452, 0.42857143, -1.0
    %v517 = vsel %vm453, 0.42857143, -1.0
    %v518 = vsel %vm454, 0.42857143, -1.0
    %v519 = vsel %vm455, 0.42857143, -1.0
    %v520 = vsel %vm456, 0.42857143, -1.0
    %v521 = vsel %vm457, 0.42857143, -1.0
    %v522 = vsel %vm458, 0.42857143, -1.0
    %v523 = vsel %vm459, 0.42857143, -1.0
    %v524 = vsel %vm460, 0.42857143, -1.0
    %v525 = vsel %vm461, 0.42857143, -1.0
    %v526 = vsel %vm462, 0.42857143, -1.0
    %v527 = vsel %vm463, 0.42857143, -1.0
    %v528 = vsel %vm464, 0.42857143, -1.0
    %v529 = vsel %vm465, 0.42857143, -1.0
    %v530 = vsel %vm466, 0.42857143, -1.0
    %v531 = vsel %vm467, 0.42857143, -1.0
    %v532 = vsel %vm468, 0.42857143, -1.0
    %v533 = vsel %vm469, 0.42857143, -1.0
    %v534 = vsel %vm470, 0.42857143, -1.0
    %v535 = vsel %vm471, 0.42857143, -1.0
    %v536 = vsel %vm472, 0.42857143, -1.0
    %v537 = vsel %vm473, 0.42857143, -1.0
    %v538 = vsel %vm474, 0.42857143, -1.0
    %v539 = vsel %vm475, 0.42857143, -1.0
    %v540 = vsel %vm476, 0.42857143, -1.0
    %v541 = vsel %vm477, 0.42857143, -1.0
    %v542 = vsel %vm478, 0.42857143, -1.0
    %v543 = vsel %vm479, 0.42857143, -1.0
    %v544 = vsel %vm480, 0.42857143, -1.0
    %v545 = vsel %vm481, 0.42857143, -1.0
    %v546 = vsel %vm482, 0.42857143, -1.0
    %v547 = vsel %vm483, 0.42857143, -1.0
    %v548 = vsel %vm484, 0.42857143, -1.0
    %v549 = vsel %vm485, 0.42857143, -1.0
    %v550 = vsel %vm486, 0.42857143, -1.0
    %v551 = vsel %vm487, 0.42857143, -1.0
    %v552 = vsel %vm488, 0.42857143, -1.0
    %v553 = vsel %vm489, 0.42857143, -1.0
    %v554 = vsel %vm490, 0.42857143, -1.0
    %v555 = vsel %vm491, 0.42857143, -1.0
    %v556 = vmul.f32 %v492, %v300
    %v557 = vmul.f32 %v493, %v301
    %v558 = vmul.f32 %v494, %v302
    %v559 = vmul.f32 %v495, %v303
    %v560 = vmul.f32 %v496, %v304
    %v561 = vmul.f32 %v497, %v305
    %v562 = vmul.f32 %v498, %v306
    %v563 = vmul.f32 %v499, %v307
    %v564 = vmul.f32 %v500, %v308
    %v565 = vmul.f32 %v501, %v309
    %v566 = vmul.f32 %v502, %v310
    %v567 = vmul.f32 %v503, %v311
    %v568 = vmul.f32 %v504, %v312
    %v569 = vmul.f32 %v505, %v313
    %v570 = vmul.f32 %v506, %v314
    %v571 = vmul.f32 %v507, %v315
    %v572 = vmul.f32 %v508, %v316
    %v573 = vmul.f32 %v509, %v317
    %v574 = vmul.f32 %v510, %v318
    %v575 = vmul.f32 %v511, %v319
    %v576 = vmul.f32 %v512, %v320
    %v577 = vmul.f32 %v513, %v321
    %v578 = vmul.f32 %v514, %v322
    %v579 = vmul.f32 %v515, %v323
    %v580 = vmul.f32 %v516, %v324
    %v581 = vmul.f32 %v517, %v325
    %v582 = vmul.f32 %v518, %v326
    %v583 = vmul.f32 %v519, %v327
    %v584 = vmul.f32 %v520, %v328
    %v585 = vmul.f32 %v521, %v329
    %v586 = vmul.f32 %v522, %v330
    %v587 = vmul.f32 %v523, %v331
    %v588 = vmul.f32 %v524, %v332
    %v589 = vmul.f32 %v525, %v333
    %v590 = vmul.f32 %v526, %v334
    %v591 = vmul.f32 %v527, %v335
    %v592 = vmul.f32 %v528, %v336
    %v593 = vmul.f32 %v529, %v337
    %v594 = vmul.f32 %v530, %v338
    %v595 = vmul.f32 %v531, %v339
    %v596 = vmul.f32 %v532, %v340
    %v597 = vmul.f32 %v533, %v341
    %v598 = vmul.f32 %v534, %v342
    %v599 = vmul.f32 %v535, %v343
    %v600 = vmul.f32 %v536, %v344
    %v601 = vmul.f32 %v537, %v345
    %v602 = vmul.f32 %v538, %v346
    %v603 = vmul.f32 %v539, %v347
    %v604 = vmul.f32 %v540, %v348
    %v605 = vmul.f32 %v541, %v349
    %v606 = vmul.f32 %v542, %v350
    %v607 = vmul.f32 %v543, %v351
    %v608 = vmul.f32 %v544, %v352
    %v609 = vmul.f32 %v545, %v353
    %v610 = vmul.f32 %v546, %v354
    %v611 = vmul.f32 %v547, %v355
    %v612 = vmul.f32 %v548, %v356
    %v613 = vmul.f32 %v549, %v357
    %v614 = vmul.f32 %v550, %v358
    %v615 = vmul.f32 %v551, %v359
    %v616 = vmul.f32 %v552, %v360
    %v617 = vmul.f32 %v553, %v361
    %v618 = vmul.f32 %v554, %v362
    %v619 = vmul.f32 %v555, %v363
    %v620 = vadd.f32 %v44, %v556
    %v621 = vadd.f32 %v45, %v557
    %v622 = vadd.f32 %v46, %v558
    %v623 = vadd.f32 %v47, %v559
    %v624 = vadd.f32 %v48, %v560
    %v625 = vadd.f32 %v49, %v561
    %v626 = vadd.f32 %v50, %v562
    %v627 = vadd.f32 %v51, %v563
    %v628 = vadd.f32 %v52, %v564
    %v629 = vadd.f32 %v53, %v565
    %v630 = vadd.f32 %v54, %v566
    %v631 = vadd.f32 %v55, %v567
    %v632 = vadd.f32 %v56, %v568
    %v633 = vadd.f32 %v57, %v569
    %v634 = vadd.f32 %v58, %v570
    %v635 = vadd.f32 %v59, %v571
    %v636 = vadd.f32 %v60, %v572
    %v637 = vadd.f32 %v61, %v573
    %v638 = vadd.f32 %v62, %v574
    %v639 = vadd.f32 %v63, %v575
    %v640 = vadd.f32 %v64, %v576
    %v641 = vadd.f32 %v65, %v577
    %v642 = vadd.f32 %v66, %v578
    %v643 = vadd.f32 %v67, %v579
    %v644 = vadd.f32 %v68, %v580
    %v645 = vadd.f32 %v69, %v581
    %v646 = vadd.f32 %v70, %v582
    %v647 = vadd.f32 %v71, %v583
    %v648 = vadd.f32 %v72, %v584
    %v649 = vadd.f32 %v73, %v585
    %v650 = vadd.f32 %v74, %v586
    %v651 = vadd.f32 %v75, %v587
    %v652 = vadd.f32 %v76, %v588
    %v653 = vadd.f32 %v77, %v589
    %v654 = vadd.f32 %v78, %v590
    %v655 = vadd.f32 %v79, %v591
    %v656 = vadd.f32 %v80, %v592
    %v657 = vadd.f32 %v81, %v593
    %v658 = vadd.f32 %v82, %v594
    %v659 = vadd.f32 %v83, %v595
    %v660 = vadd.f32 %v84, %v596
    %v661 = vadd.f32 %v85, %v597
    %v662 = vadd.f32 %v86, %v598
    %v663 = vadd.f32 %v87, %v599
    %v664 = vadd.f32 %v88, %v600
    %v665 = vadd.f32 %v89, %v601
    %v666 = vadd.f32 %v90, %v602
    %v667 = vadd.f32 %v91, %v603
    %v668 = vadd.f32 %v92, %v604
    %v669 = vadd.f32 %v93, %v605
    %v670 = vadd.f32 %v94, %v606
    %v671 = vadd.f32 %v95, %v607
    %v672 = vadd.f32 %v96, %v608
    %v673 = vadd.f32 %v97, %v609
    %v674 = vadd.f32 %v98, %v610
    %v675 = vadd.f32 %v99, %v611
    %v676 = vadd.f32 %v100, %v612
    %v677 = vadd.f32 %v101, %v613
    %v678 = vadd.f32 %v102, %v614
    %v679 = vadd.f32 %v103, %v615
    %v680 = vadd.f32 %v104, %v616
    %v681 = vadd.f32 %v105, %v617
    %v682 = vadd.f32 %v106, %v618
    %v683 = vadd.f32 %v107, %v619
    %684 = vst [vmem:[#allocation7] sm:$0xff] %v620
    %685 = vst [vmem:[#allocation7 + $0x8] sm:$0xff] %v621
    %686 = vst [vmem:[#allocation7 + $0x10] sm:$0xff] %v622
    %687 = vst [vmem:[#allocation7 + $0x18] sm:$0xff] %v623
    %688 = vst [vmem:[#allocation7 + $0x20] sm:$0xff] %v624
    %689 = vst [vmem:[#allocation7 + $0x28] sm:$0xff] %v625
    %690 = vst [vmem:[#allocation7 + $0x30] sm:$0xff] %v626
    %691 = vst [vmem:[#allocation7 + $0x38] sm:$0xff] %v627
    %692 = vst [vmem:[#allocation7 + $0x40] sm:$0xff] %v628
    %693 = vst [vmem:[#allocation7 + $0x48] sm:$0xff] %v629
    %694 = vst [vmem:[#allocation7 + $0x50] sm:$0xff] %v630
    %695 = vst [vmem:[#allocation7 + $0x58] sm:$0xff] %v631
    %696 = vst [vmem:[#allocation7 + $0x60] sm:$0xff] %v632
    %697 = vst [vmem:[#allocation7 + $0x68] sm:$0xff] %v633
    %698 = vst [vmem:[#allocation7 + $0x70] sm:$0xff] %v634
    %699 = vst [vmem:[#allocation7 + $0x78] sm:$0xff] %v635
    %700 = vst [vmem:[#allocation7 + $0x80] sm:$0xff] %v636
    %701 = vst [vmem:[#allocation7 + $0x88] sm:$0xff] %v637
    %702 = vst [vmem:[#allocation7 + $0x90] sm:$0xff] %v638
    %703 = vst [vmem:[#allocation7 + $0x98] sm:$0xff] %v639
    %704 = vst [vmem:[#allocation7 + $0xa0] sm:$0xff] %v640
    %705 = vst [vmem:[#allocation7 + $0xa8] sm:$0xff] %v641
    %706 = vst [vmem:[#allocation7 + $0xb0] sm:$0xff] %v642
    %707 = vst [vmem:[#allocation7 + $0xb8] sm:$0xff] %v643
    %708 = vst [vmem:[#allocation7 + $0xc0] sm:$0xff] %v644
    %709 = vst [vmem:[#allocation7 + $0xc8] sm:$0xff] %v645
    %710 = vst [vmem:[#allocation7 + $0xd0] sm:$0xff] %v646
    %711 = vst [vmem:[#allocation7 + $0xd8] sm:$0xff] %v647
    %712 = vst [vmem:[#allocation7 + $0xe0] sm:$0xff] %v648
    %713 = vst [vmem:[#allocation7 + $0xe8] sm:$0xff] %v649
    %714 = vst [vmem:[#allocation7 + $0xf0] sm:$0xff] %v650
    %715 = vst [vmem:[#allocation7 + $0xf8] sm:$0xff] %v651
    %716 = vst [vmem:[#allocation7 + $0x100] sm:$0xff] %v652
    %717 = vst [vmem:[#allocation7 + $0x108] sm:$0xff] %v653
    %718 = vst [vmem:[#allocation7 + $0x110] sm:$0xff] %v654
    %719 = vst [vmem:[#allocation7 + $0x118] sm:$0xff] %v655
    %720 = vst [vmem:[#allocation7 + $0x120] sm:$0xff] %v656
    %721 = vst [vmem:[#allocation7 + $0x128] sm:$0xff] %v657
    %722 = vst [vmem:[#allocation7 + $0x130] sm:$0xff] %v658
    %723 = vst [vmem:[#allocation7 + $0x138] sm:$0xff] %v659
    %724 = vst [vmem:[#allocation7 + $0x140] sm:$0xff] %v660
    %725 = vst [vmem:[#allocation7 + $0x148] sm:$0xff] %v661
    %726 = vst [vmem:[#allocation7 + $0x150] sm:$0xff] %v662
    %727 = vst [vmem:[#allocation7 + $0x158] sm:$0xff] %v663
    %728 = vst [vmem:[#allocation7 + $0x160] sm:$0xff] %v664
    %729 = vst [vmem:[#allocation7 + $0x168] sm:$0xff] %v665
    %730 = vst [vmem:[#allocation7 + $0x170] sm:$0xff] %v666
    %731 = vst [vmem:[#allocation7 + $0x178] sm:$0xff] %v667
    %732 = vst [vmem:[#allocation7 + $0x180] sm:$0xff] %v668
    %733 = vst [vmem:[#allocation7 + $0x188] sm:$0xff] %v669
    %734 = vst [vmem:[#allocation7 + $0x190] sm:$0xff] %v670
    %735 = vst [vmem:[#allocation7 + $0x198] sm:$0xff] %v671
    %736 = vst [vmem:[#allocation7 + $0x1a0] sm:$0xff] %v672
    %737 = vst [vmem:[#allocation7 + $0x1a8] sm:$0xff] %v673
    %738 = vst [vmem:[#allocation7 + $0x1b0] sm:$0xff] %v674
    %739 = vst [vmem:[#allocation7 + $0x1b8] sm:$0xff] %v675
    %740 = vst [vmem:[#allocation7 + $0x1c0] sm:$0xff] %v676
    %741 = vst [vmem:[#allocation7 + $0x1c8] sm:$0xff] %v677
    %742 = vst [vmem:[#allocation7 + $0x1d0] sm:$0xff] %v678
    %743 = vst [vmem:[#allocation7 + $0x1d8] sm:$0xff] %v679
    %744 = vst [vmem:[#allocation7 + $0x1e0] sm:$0xff] %v680
    %745 = vst [vmem:[#allocation7 + $0x1e8] sm:$0xff] %v681
    %746 = vst [vmem:[#allocation7 + $0x1f0] sm:$0xff] %v682
    %747 = vst [vmem:[#allocation7 + $0x1f8] sm:$0xff] %v683
    // Predicated region
    $region18: #{tpu_custom_call.1} parent=1 // pred_check
      _
    $region19: #{tpu_custom_call.1} parent=1 // pred_check_branch
      %749 = sbr.rel (0) target = $region21
    $region20: #{tpu_custom_call.1} parent=1 // pred_region
      %751 = vsyncadd [#allocation4], 0
      %s752 = sshll.u32 [#allocation7], 4
      %s753 = int_to_ptr.vmem [resolvable:$true] %s752
      %s754 = sshll.u32 %s2, 4
      %s755 = int_to_ptr.hbm [resolvable:$true] %s754
      %760 = dma.vmem_to_hbm [thread:$0]  %s753, 8192, %s755, [#allocation4], 256, 256, 16
    $region21: #{tpu_custom_call.1} parent=1 // pred_fallthru
      _
    // Predicated region
    $region22: #{tpu_custom_call.1} parent=1 // pred_check
      _
    $region23: #{tpu_custom_call.1} parent=1 // pred_check_branch
      %762 = sbr.rel (0) target = $region25
    $region24: #{tpu_custom_call.1} parent=1 // pred_region
      %764 = dma.done [#allocation4], 8192
    $region25: #{tpu_custom_call.1} parent=1 // pred_fallthru
      _
    %765 = vsyncpa [#allocation3], 1
    %766 = vsyncpa [#allocation6], 1
    %767 = vsyncpa [#allocation4], 1

</llo_original>
